<compile_context>
chip_gen: v7x
topology: tpu7x:2x2x1
jax: 0.10.0
libtpu: 0.0.40
codegen_flags: <defaults>
</compile_context>

<pallas_src>
from functools import partial

import numpy as np
import jax
import jax.numpy as jnp
from jax.experimental import pallas as pl
from jax.experimental.pallas import tpu as pltpu

# ----- hyper-parameters (cfg.LOSS.TEMPERATURE + ASL defaults) -----------------
TEMPERATURE = 0.5
GAMMA_NEG = 4.0        # focal exponent for negatives (via pow-by-squaring)
GAMMA_POS = 1.0        # focal exponent for positives
CLIP = 0.05
EPS = 1e-8
NUM_P_ITERS = 5


def _full_sum_2d(x):
    """Sum over both axes keeping (1, 1): lane reduce first, then sublanes."""
    return jnp.sum(jnp.sum(x, axis=1, keepdims=True), axis=0, keepdims=True)


# ====================== kernel A: multilabel (ASL) branch ======================
def _multilabel_kernel(feat_ref, ml_txt_ref, ml_tgt_ref, ml_sim_ref, part_ref):
    """Grid over C_ml tiles; each step is fully independent (parallel axis).

    feat_ref   VMEM (B, D)        bf16  resident
    ml_txt_ref VMEM (TC, D)       bf16  tile j of multilabel text features
    ml_tgt_ref VMEM (B, TC)       bf16  tile j of binary multilabel targets
    ml_sim_ref VMEM (B, TC)       f32   out: similarity tile
    part_ref   VMEM (8, 128)      f32   out: per-tile partial ASL sum (bcast)
    """
    inv_temp = jnp.float32(1.0 / TEMPERATURE)

    # feats @ ml_text_tile.T without an explicit in-kernel transpose
    # (dim1/dim1 contraction is native on the MXU).
    sim = jax.lax.dot_general(
        feat_ref[...], ml_txt_ref[...],
        dimension_numbers=(((1,), (1,)), ((), ())),
        preferred_element_type=jnp.float32) * inv_temp
    ml_sim_ref[...] = sim

    y = ml_tgt_ref[...]
    is_pos = y > 0.5
    # sigmoid via EUP approx reciprocal (per-element hot path only)
    xs_pos = pl.reciprocal(1.0 + jnp.exp(-sim), approx=True)
    xs_neg = jnp.minimum(1.0 - xs_pos + CLIP, 1.0)
    # one log per element: select the probability first, then log
    log_p = jnp.log(jnp.maximum(jnp.where(is_pos, xs_pos, xs_neg), EPS))
    # focal weight by squaring (binary targets: exponent GAMMA_POS=1 / GAMMA_NEG=4)
    # TODO(synk): soft (non-binary) multilabel targets require the exp/log pow form.
    base = jnp.where(is_pos, 1.0 - xs_pos, 1.0 - xs_neg)
    b2 = base * base
    w = jnp.where(is_pos, base, b2 * b2)

    # per-row lane reduce, then one sublane reduce per tile; write the scalar
    # broadcast over an aligned (8, 128) slab -> no cross-step scratch, so the
    # grid axis can be "parallel" (v7x megacore).
    row_part = jnp.sum(log_p * w, axis=1, keepdims=True)          # (B, 1)
    tile_sum = jnp.sum(row_part, axis=0, keepdims=True)           # (1, 1)
    part_ref[...] = jnp.broadcast_to(tile_sum, (8, 128))


# ==================== kernel B: multiclass (Sinkhorn) branch ===================
def _multiclass_kernel(m_ref, feat_ref, mc_txt_ref, mc_tgt_ref,
                       mc_sim_ref, mc_loss_ref):
    """Single invocation; everything resident.

    m_ref      SMEM (1,)      f32 : m = #multiclass + 0.1 * #multilabel
    feat_ref   VMEM (B, D)    bf16
    mc_txt_ref VMEM (C_mc, D) bf16
    mc_tgt_ref VMEM (B, C_mc) f32
    mc_sim_ref VMEM (B, C_mc) f32 out
    mc_loss_ref VMEM (1, 1)   f32 out
    """
    inv_temp = jnp.float32(1.0 / TEMPERATURE)
    sim = jax.lax.dot_general(
        feat_ref[...], mc_txt_ref[...],
        dimension_numbers=(((1,), (1,)), ((), ())),
        preferred_element_type=jnp.float32) * inv_temp
    mc_sim_ref[...] = sim

    m = m_ref[0]

    # iterate_P in row-max-stabilised factor form: P == diag(f) @ exp(sim - r).
    r = jnp.max(sim, axis=1, keepdims=True)                        # (B, 1)
    e = jnp.exp(sim - r)                                           # (B, C) in (0,1]
    s = jnp.sum(e, axis=1, keepdims=True)                          # (B, 1), >= 1
    log_s = jnp.log(s)

    # First row-normalisation (scaling = max(rowsum(exp(sim)), 1)) computed
    # stably: exp(r)*s >= 1  <=>  r + log(s) >= 0, and exp(r) is only used
    # where r + log(s) < 0 (i.e. exp(r) <= 1, never overflows).
    f = jnp.where(r + log_s >= 0.0, 1.0 / s, jnp.exp(r))           # (B, 1)
    total = jnp.sum(f * s, axis=0, keepdims=True)                  # (1, 1)
    f = f * (m / total)
    # remaining Sinkhorn iterations; exact division (cheap, better numerics)
    for _ in range(NUM_P_ITERS - 1):
        f = f / jnp.maximum(f * s, 1.0)
        total = jnp.sum(f * s, axis=0, keepdims=True)
        f = f * (m / total)

    # -sum(tgt * log P) = -sum(tgt * (sim - r)) - sum(rowsum(tgt) * log f)
    tgt = mc_tgt_ref[...]
    term_sim = _full_sum_2d(tgt * (sim - r))                       # (1, 1)
    term_logf = jnp.sum(jnp.sum(tgt, axis=1, keepdims=True) * jnp.log(f),
                        axis=0, keepdims=True)                     # (1, 1)
    mc_loss_ref[...] = -(term_sim + term_logf)


# ------------------------------ VMEM sizing helpers ----------------------------
def _vmem_capacity_bytes():
    try:
        info = pltpu.get_tpu_info()
        cap = getattr(info, "vmem_capacity_bytes", None)
        if cap:
            return int(cap)
    except Exception:
        pass
    return 64 << 20   # conservative fallback: v7x per-TensorCore VMEM


def _kernel_a_vmem_bytes(batch, dim, blk):
    resident = 2 * batch * dim * 2                  # features bf16 (double-buffered)
    tiled = 2 * (blk * dim * 2                      # ml text tile bf16
                 + batch * blk * 2                  # ml targets tile bf16
                 + batch * blk * 4                  # ml sim tile f32 (out)
                 + 8 * 128 * 4)                     # partial-loss slab f32 (out)
    return resident + tiled


def _pick_ml_block(c_ml, batch, dim, budget):
    """Largest 128-multiple divisor of c_ml whose pipeline fits `budget`.

    Prefers >= 2 grid steps so a v7x megacore has something to shard; on
    single-TC chips the per-step overhead of one extra step is negligible.
    """
    cands = [b for b in range(128, c_ml + 1, 128) if c_ml % b == 0]
    multi = [b for b in cands if c_ml // b >= 2] or cands
    fit = [b for b in multi if _kernel_a_vmem_bytes(batch, dim, b) <= budget]
    # if nothing fits the budget, fall back to the smallest tile; the explicit
    # vmem_limit below is still sized from the real requirement.
    return max(fit) if fit else min(multi)


# --------------------------------- wrapper -------------------------------------
@partial(jax.jit, static_argnames=("ml_block",))
def classify_anything_mixed_ot_loss(features, ml_text, mc_text,
                                    ml_targets, mc_targets, dataset_indices,
                                    *, ml_block=None):
    B, D = features.shape
    c_ml = ml_text.shape[0]
    c_mc = mc_text.shape[0]

    # TODO(synk): pad/mask for multilabel class counts not a multiple of 128.
    assert c_ml % 128 == 0

    cap = _vmem_capacity_bytes()
    budget = (cap * 3) // 4          # ~96 MiB on v5e/v6e (128 MiB), ~48 MiB on v7x

    if ml_block is None:
        ml_block = _pick_ml_block(c_ml, B, D, budget)
    ml_block = int(min(int(ml_block), c_ml))
    assert ml_block % 128 == 0 and c_ml % ml_block == 0
    num_tiles = c_ml // ml_block

    # m = (#multiclass rows) + 0.1 * (#multilabel rows)
    m = (jnp.sum(dataset_indices == 1).astype(jnp.float32)
         + 0.1 * jnp.sum(dataset_indices == 0).astype(jnp.float32)).reshape(1)

    # bf16 MXU inputs; all elementwise math stays f32 inside the kernels.
    feats_b = features.astype(jnp.bfloat16)
    ml_text_b = ml_text.astype(jnp.bfloat16)
    mc_text_b = mc_text.astype(jnp.bfloat16)
    # binary multilabel targets streamed as bf16 (0/1 exact) -> halves target bytes
    ml_targets_b = ml_targets.astype(jnp.bfloat16)
    mc_targets_f = mc_targets.astype(jnp.float32)

    # --- explicit VMEM limits from the real requirement (never capped below it)
    req_a = _kernel_a_vmem_bytes(B, D, ml_block)
    vmem_limit_a = int(min(max(req_a + req_a // 4 + (1 << 20), 8 << 20), cap))
    req_b = (B * D * 2 + c_mc * D * 2 + B * c_mc * 4        # inputs
             + B * c_mc * 4                                  # mc_sim out
             + 4 * B * c_mc * 4)                             # f32 temporaries
    vmem_limit_b = int(min(max(2 * req_b + (2 << 20), 8 << 20), cap))

    # ----------------------- kernel A: multilabel branch -----------------------
    grid_spec_a = pltpu.PrefetchScalarGridSpec(
        num_scalar_prefetch=0,
        grid=(num_tiles,),
        in_specs=[
            pl.BlockSpec((B, D), lambda j: (0, 0)),            # features (resident)
            pl.BlockSpec((ml_block, D), lambda j: (j, 0)),     # ml text (tiled)
            pl.BlockSpec((B, ml_block), lambda j: (0, j)),     # ml targets (tiled)
        ],
        out_specs=[
            pl.BlockSpec((B, ml_block), lambda j: (0, j)),     # ml_sim (tiled)
            pl.BlockSpec((8, 128), lambda j: (j, 0)),          # per-tile partial
        ],
    )
    ml_sim, ml_partials = pl.pallas_call(
        _multilabel_kernel,
        grid_spec=grid_spec_a,
        out_shape=(
            jax.ShapeDtypeStruct((B, c_ml), jnp.float32),
            jax.ShapeDtypeStruct((num_tiles * 8, 128), jnp.float32),
        ),
        compiler_params=pltpu.CompilerParams(
            dimension_semantics=("parallel",),
            vmem_limit_bytes=vmem_limit_a,
        ),
    )(feats_b, ml_text_b, ml_targets_b)

    # ----------------------- kernel B: multiclass branch -----------------------
    grid_spec_b = pltpu.PrefetchScalarGridSpec(
        num_scalar_prefetch=0,
        grid=(1,),
        in_specs=[
            pl.BlockSpec((1,), lambda j: (0,),
                         memory_space=pltpu.MemorySpace.SMEM),  # m
            pl.BlockSpec((B, D), lambda j: (0, 0)),             # features
            pl.BlockSpec((c_mc, D), lambda j: (0, 0)),          # mc text
            pl.BlockSpec((B, c_mc), lambda j: (0, 0)),          # mc targets
        ],
        out_specs=[
            pl.BlockSpec((B, c_mc), lambda j: (0, 0)),          # mc_sim
            pl.BlockSpec((1, 1), lambda j: (0, 0)),             # mc_loss
        ],
    )
    mc_sim, mc_loss_arr = pl.pallas_call(
        _multiclass_kernel,
        grid_spec=grid_spec_b,
        out_shape=(
            jax.ShapeDtypeStruct((B, c_mc), jnp.float32),
            jax.ShapeDtypeStruct((1, 1), jnp.float32),
        ),
        compiler_params=pltpu.CompilerParams(
            dimension_semantics=("arbitrary",),
            vmem_limit_bytes=vmem_limit_b,
        ),
    )(m, feats_b, mc_text_b, mc_targets_f)

    # reduce per-tile partials (each (8,128) slab holds one broadcast scalar)
    ml_loss = -jnp.sum(ml_partials.reshape(num_tiles, 8, 128)[:, 0, 0])
    mc_loss = mc_loss_arr[0, 0]
    total = mc_loss + ml_loss
    losses = {"loss": total,
              "multiclass_loss": mc_loss,
              "multilabel_loss": ml_loss}
    return losses, ml_sim, mc_sim


# -------------------------- pure-JAX reference (check) --------------------------
def _reference(features, ml_text, mc_text, ml_targets, mc_targets, dataset_indices):
    hp = jax.lax.Precision.HIGHEST
    ml_sim = jnp.dot(features, ml_text.T, precision=hp) / TEMPERATURE
    mc_sim = jnp.dot(features, mc_text.T, precision=hp) / TEMPERATURE
    m = (jnp.sum(dataset_indices == 1) + 0.1 * jnp.sum(dataset_indices == 0)
         ).astype(jnp.float32)
    P = jnp.exp(mc_sim)
    for _ in range(NUM_P_ITERS):
        scaling = jnp.maximum(P.sum(axis=1), 1.0)
        P = P / scaling[:, None]
        P = P * m / P.sum()
    mc_loss = -jnp.sum(mc_targets * jnp.log(P))
    xs_pos = jax.nn.sigmoid(ml_sim)
    xs_neg = jnp.minimum(1.0 - xs_pos + CLIP, 1.0)
    loss = (ml_targets * jnp.log(jnp.maximum(xs_pos, EPS))
            + (1.0 - ml_targets) * jnp.log(jnp.maximum(xs_neg, EPS)))
    base = 1.0 - xs_pos * ml_targets - xs_neg * (1.0 - ml_targets)
    expo = GAMMA_POS * ml_targets + GAMMA_NEG * (1.0 - ml_targets)
    ml_loss = -jnp.sum(loss * jnp.power(base, expo))
    return mc_loss + ml_loss, mc_loss, ml_loss, ml_sim, mc_sim


# ----------------------------------- main ---------------------------------------
if __name__ == "__main__":
    B, D, C_ML, C_MC = 8, 128, 256, 128   # small shapes; C_ml grid has 2 steps

    key = jax.random.PRNGKey(0)
    k1, k2, k3, k4, k5 = jax.random.split(key, 5)

    def _unit(x):
        return x / jnp.linalg.norm(x, axis=-1, keepdims=True)

    features = _unit(jax.random.normal(k1, (B, D), jnp.float32))
    ml_text = _unit(jax.random.normal(k2, (C_ML, D), jnp.float32))
    mc_text = _unit(jax.random.normal(k3, (C_MC, D), jnp.float32))

    # dataset_indices: 0 = multilabel sample, 1 = multiclass sample
    dataset_indices = (jnp.arange(B) % 2).astype(jnp.int32)

    # "already converted" targets (stand-in for convert_targets output)
    ml_mask = (dataset_indices == 0)[:, None].astype(jnp.float32)
    mc_mask = (dataset_indices == 1)[:, None].astype(jnp.float32)
    ml_targets = ((jax.random.uniform(k4, (B, C_ML)) < 0.1)
                  .astype(jnp.float32)) * ml_mask
    mc_cls = jax.random.randint(k5, (B,), 0, C_MC)
    mc_targets = jax.nn.one_hot(mc_cls, C_MC, dtype=jnp.float32) * mc_mask

    losses, ml_sim, mc_sim = classify_anything_mixed_ot_loss(
        features, ml_text, mc_text, ml_targets, mc_targets, dataset_indices)
    jax.block_until_ready(losses["loss"])

    # PyTorch-style row slicing of the sim matrices (dynamic shape -> numpy glue)
    di = np.asarray(dataset_indices)
    _multilabel_sim_matrix = np.asarray(ml_sim)[di == 0]
    _multiclass_sim_matrix = np.asarray(mc_sim)[di == 1]

    # correctness check against plain-JAX reference
    ref_total, ref_mc, ref_ml, ref_ml_sim, ref_mc_sim = _reference(
        features, ml_text, mc_text, ml_targets, mc_targets, dataset_indices)

    assert np.all(np.isfinite(np.asarray(losses["loss"])))
    np.testing.assert_allclose(np.asarray(ml_sim), np.asarray(ref_ml_sim),
                               rtol=5e-2, atol=5e-2)
    np.testing.assert_allclose(np.asarray(mc_sim), np.asarray(ref_mc_sim),
                               rtol=5e-2, atol=5e-2)
    np.testing.assert_allclose(float(losses["multiclass_loss"]), float(ref_mc),
                               rtol=5e-2, atol=5e-2)
    np.testing.assert_allclose(float(losses["multilabel_loss"]), float(ref_ml),
                               rtol=5e-2, atol=5e-2)
    np.testing.assert_allclose(float(losses["loss"]), float(ref_total),
                               rtol=5e-2, atol=5e-2)

    print("KERNEL_OK")
</pallas_src>

<mosaic_0001>
module attributes {stable_mosaic.version = 11 : i64} {
  func.func @_multilabel_kernel(%arg0: i32, %arg1: memref<8x128xbf16, #tpu.memory_space<vmem>>, %arg2: memref<128x128xbf16, #tpu.memory_space<vmem>>, %arg3: memref<8x128xbf16, #tpu.memory_space<vmem>>, %arg4: memref<8x128xf32, #tpu.memory_space<vmem>>, %arg5: memref<8x128xf32, #tpu.memory_space<vmem>>) attributes {dimension_semantics = [#tpu.dimension_semantics<parallel>], iteration_bounds = array<i64: 2>, scalar_prefetch = 0 : i64, scratch_operands = 0 : i64, tpu.core_type = #tpu.core_type<tc>, window_params = [{pipeline_mode = #tpu.pipeline_mode<synchronous>, transform_indices = @transform_0, window_bounds = array<i64: 8, 128>}, {transform_indices = @transform_1, window_bounds = array<i64: 128, 128>}, {transform_indices = @transform_2, window_bounds = array<i64: 8, 128>}, {transform_indices = @transform_3, window_bounds = array<i64: 8, 128>}, {transform_indices = @transform_4, window_bounds = array<i64: 8, 128>}]} {
    %c0 = arith.constant 0 : index
    %c0_0 = arith.constant 0 : index
    %0 = vector.load %arg1[%c0, %c0_0] : memref<8x128xbf16, #tpu.memory_space<vmem>>, vector<8x128xbf16>
    %c0_1 = arith.constant 0 : index
    %c0_2 = arith.constant 0 : index
    %1 = vector.load %arg2[%c0_1, %c0_2] : memref<128x128xbf16, #tpu.memory_space<vmem>>, vector<128x128xbf16>
    %cst = arith.constant dense<0.000000e+00> : vector<8x128xf32>
    %2 = tpu.matmul %0, %1, %cst {dimension_numbers = #tpu.dot_dimension_numbers<[1], [1], [0], [0], [0, 0, 1, 0], [], []>} : vector<8x128xbf16>, vector<128x128xbf16>, vector<8x128xf32> -> vector<8x128xf32>
    %cst_3 = arith.constant 2.000000e+00 : f32
    %3 = vector.broadcast %cst_3 : f32 to vector<8x128xf32>
    %4 = arith.mulf %2, %3 : vector<8x128xf32>
    %c0_4 = arith.constant 0 : index
    %c0_5 = arith.constant 0 : index
    %5 = vector.load %arg4[%c0_4, %c0_5] : memref<8x128xf32, #tpu.memory_space<vmem>>, vector<8x128xf32>
    tpu.vector_store %arg4[%c0_4, %c0_5], %4 {strides = array<i32>} : memref<8x128xf32, #tpu.memory_space<vmem>>, vector<8x128xf32>,
    %c0_6 = arith.constant 0 : index
    %c0_7 = arith.constant 0 : index
    %6 = vector.load %arg3[%c0_6, %c0_7] : memref<8x128xbf16, #tpu.memory_space<vmem>>, vector<8x128xbf16>
    %cst_8 = arith.constant 5.000000e-01 : bf16
    %7 = vector.broadcast %cst_8 : bf16 to vector<8x128xbf16>
    %8 = arith.cmpf ogt, %6, %7 : vector<8x128xbf16>
    %cst_9 = arith.constant 0.000000e+00 : f32
    %9 = vector.broadcast %cst_9 : f32 to vector<8x128xf32>
    %10 = arith.subf %9, %4 : vector<8x128xf32>
    %11 = math.exp %10 : vector<8x128xf32>
    %cst_10 = arith.constant 1.000000e+00 : f32
    %12 = vector.broadcast %cst_10 : f32 to vector<8x128xf32>
    %13 = arith.addf %12, %11 : vector<8x128xf32>
    %14 = tpu.reciprocal %13 {approx = true} : vector<8x128xf32> -> vector<8x128xf32>
    %cst_11 = arith.constant 1.000000e+00 : f32
    %15 = vector.broadcast %cst_11 : f32 to vector<8x128xf32>
    %16 = arith.subf %15, %14 : vector<8x128xf32>
    %cst_12 = arith.constant 5.000000e-02 : f32
    %17 = vector.broadcast %cst_12 : f32 to vector<8x128xf32>
    %18 = arith.addf %16, %17 : vector<8x128xf32>
    %cst_13 = arith.constant 1.000000e+00 : f32
    %19 = vector.broadcast %cst_13 : f32 to vector<8x128xf32>
    %20 = arith.minimumf %18, %19 : vector<8x128xf32>
    %21 = arith.select %8, %14, %20 : vector<8x128xi1>, vector<8x128xf32>
    %cst_14 = arith.constant 9.99999993E-9 : f32
    %22 = vector.broadcast %cst_14 : f32 to vector<8x128xf32>
    %23 = arith.maximumf %21, %22 : vector<8x128xf32>
    %24 = math.log %23 : vector<8x128xf32>
    %cst_15 = arith.constant 1.000000e+00 : f32
    %25 = vector.broadcast %cst_15 : f32 to vector<8x128xf32>
    %26 = arith.subf %25, %14 : vector<8x128xf32>
    %cst_16 = arith.constant 1.000000e+00 : f32
    %27 = vector.broadcast %cst_16 : f32 to vector<8x128xf32>
    %28 = arith.subf %27, %20 : vector<8x128xf32>
    %29 = arith.select %8, %26, %28 : vector<8x128xi1>, vector<8x128xf32>
    %30 = arith.mulf %29, %29 : vector<8x128xf32>
    %31 = arith.mulf %30, %30 : vector<8x128xf32>
    %32 = arith.select %8, %29, %31 : vector<8x128xi1>, vector<8x128xf32>
    %33 = arith.mulf %24, %32 : vector<8x128xf32>
    %cst_17 = arith.constant dense<0.000000e+00> : vector<8xf32>
    %34 = vector.multi_reduction <add>, %33, %cst_17 [1] : vector<8x128xf32> to vector<8xf32>
    %35 = vector.shape_cast %34 : vector<8xf32> to vector<8x1xf32>
    %cst_18 = arith.constant dense<0.000000e+00> : vector<1xf32>
    %36 = vector.multi_reduction <add>, %35, %cst_18 [0] : vector<8x1xf32> to vector<1xf32>
    %37 = vector.shape_cast %36 : vector<1xf32> to vector<1x1xf32>
    %38 = vector.shape_cast %37 : vector<1x1xf32> to vector<1x1xf32>
    %39 = vector.broadcast %38 : vector<1x1xf32> to vector<8x128xf32>
    %c0_19 = arith.constant 0 : index
    %c0_20 = arith.constant 0 : index
    %40 = vector.load %arg5[%c0_19, %c0_20] : memref<8x128xf32, #tpu.memory_space<vmem>>, vector<8x128xf32>
    tpu.vector_store %arg5[%c0_19, %c0_20], %39 {strides = array<i32>} : memref<8x128xf32, #tpu.memory_space<vmem>>, vector<8x128xf32>,
    return
  }
  func.func @transform_0(%arg0: i32) -> (i32, i32) {
    %c0_i32 = arith.constant 0 : i32
    %c0_i32_0 = arith.constant 0 : i32
    %c0_i32_1 = arith.constant 0 : i32
    return %c0_i32, %c0_i32_0 : i32, i32
  }
  func.func @transform_1(%arg0: i32) -> (i32, i32) {
    %c0_i32 = arith.constant 0 : i32
    %c0_i32_0 = arith.constant 0 : i32
    return %arg0, %c0_i32 : i32, i32
  }
  func.func @transform_2(%arg0: i32) -> (i32, i32) {
    %c0_i32 = arith.constant 0 : i32
    %c0_i32_0 = arith.constant 0 : i32
    return %c0_i32, %arg0 : i32, i32
  }
  func.func @transform_3(%arg0: i32) -> (i32, i32) {
    %c0_i32 = arith.constant 0 : i32
    %c0_i32_0 = arith.constant 0 : i32
    return %c0_i32, %arg0 : i32, i32
  }
  func.func @transform_4(%arg0: i32) -> (i32, i32) {
    %c0_i32 = arith.constant 0 : i32
    %c0_i32_0 = arith.constant 0 : i32
    return %arg0, %c0_i32 : i32, i32
  }
}

module attributes {stable_mosaic.version = 11 : i64} {
  func.func @_multiclass_kernel(%arg0: i32, %arg1: memref<1xf32, #tpu.memory_space<smem>>, %arg2: memref<8x128xbf16, #tpu.memory_space<vmem>>, %arg3: memref<128x128xbf16, #tpu.memory_space<vmem>>, %arg4: memref<8x128xf32, #tpu.memory_space<vmem>>, %arg5: memref<8x128xf32, #tpu.memory_space<vmem>>, %arg6: memref<1x1xf32, #tpu.memory_space<vmem>>) attributes {dimension_semantics = [#tpu.dimension_semantics<arbitrary>], iteration_bounds = array<i64: 1>, scalar_prefetch = 0 : i64, scratch_operands = 0 : i64, tpu.core_type = #tpu.core_type<tc>, window_params = [{transform_indices = @transform_0, window_bounds = array<i64: 1>}, {pipeline_mode = #tpu.pipeline_mode<synchronous>, transform_indices = @transform_1, window_bounds = array<i64: 8, 128>}, {pipeline_mode = #tpu.pipeline_mode<synchronous>, transform_indices = @transform_2, window_bounds = array<i64: 128, 128>}, {pipeline_mode = #tpu.pipeline_mode<synchronous>, transform_indices = @transform_3, window_bounds = array<i64: 8, 128>}, {pipeline_mode = #tpu.pipeline_mode<synchronous>, transform_indices = @transform_4, window_bounds = array<i64: 8, 128>}, {pipeline_mode = #tpu.pipeline_mode<synchronous>, transform_indices = @transform_5, window_bounds = array<i64: 1, 1>}]} {
    %c0 = arith.constant 0 : index
    %c0_0 = arith.constant 0 : index
    %0 = vector.load %arg2[%c0, %c0_0] : memref<8x128xbf16, #tpu.memory_space<vmem>>, vector<8x128xbf16>
    %c0_1 = arith.constant 0 : index
    %c0_2 = arith.constant 0 : index
    %1 = vector.load %arg3[%c0_1, %c0_2] : memref<128x128xbf16, #tpu.memory_space<vmem>>, vector<128x128xbf16>
    %cst = arith.constant dense<0.000000e+00> : vector<8x128xf32>
    %2 = tpu.matmul %0, %1, %cst {dimension_numbers = #tpu.dot_dimension_numbers<[1], [1], [0], [0], [0, 0, 1, 0], [], []>} : vector<8x128xbf16>, vector<128x128xbf16>, vector<8x128xf32> -> vector<8x128xf32>
    %cst_3 = arith.constant 2.000000e+00 : f32
    %3 = vector.broadcast %cst_3 : f32 to vector<8x128xf32>
    %4 = arith.mulf %2, %3 : vector<8x128xf32>
    %c0_4 = arith.constant 0 : index
    %c0_5 = arith.constant 0 : index
    %5 = vector.load %arg5[%c0_4, %c0_5] : memref<8x128xf32, #tpu.memory_space<vmem>>, vector<8x128xf32>
    tpu.vector_store %arg5[%c0_4, %c0_5], %4 {strides = array<i32>} : memref<8x128xf32, #tpu.memory_space<vmem>>, vector<8x128xf32>,
    %c0_6 = arith.constant 0 : index
    %6 = memref.load %arg1[%c0_6] : memref<1xf32, #tpu.memory_space<smem>>
    %cst_7 = arith.constant dense<0xFF800000> : vector<8xf32>
    %7 = vector.multi_reduction <maximumf>, %4, %cst_7 [1] : vector<8x128xf32> to vector<8xf32>
    %8 = vector.shape_cast %7 : vector<8xf32> to vector<8x1xf32>
    %9 = vector.broadcast %8 : vector<8x1xf32> to vector<8x128xf32>
    %10 = arith.subf %4, %9 : vector<8x128xf32>
    %11 = math.exp %10 : vector<8x128xf32>
    %cst_8 = arith.constant dense<0.000000e+00> : vector<8xf32>
    %12 = vector.multi_reduction <add>, %11, %cst_8 [1] : vector<8x128xf32> to vector<8xf32>
    %13 = vector.shape_cast %12 : vector<8xf32> to vector<8x1xf32>
    %14 = math.log %13 : vector<8x1xf32>
    %15 = arith.addf %8, %14 : vector<8x1xf32>
    %cst_9 = arith.constant 0.000000e+00 : f32
    %16 = vector.broadcast %cst_9 : f32 to vector<8x1xf32>
    %17 = arith.cmpf oge, %15, %16 : vector<8x1xf32>
    %cst_10 = arith.constant 1.000000e+00 : f32
    %18 = vector.broadcast %cst_10 : f32 to vector<8x1xf32>
    %19 = arith.divf %18, %13 : vector<8x1xf32>
    %20 = math.exp %8 : vector<8x1xf32>
    %21 = arith.select %17, %19, %20 : vector<8x1xi1>, vector<8x1xf32>
    %22 = arith.mulf %21, %13 : vector<8x1xf32>
    %cst_11 = arith.constant dense<0.000000e+00> : vector<1xf32>
    %23 = vector.multi_reduction <add>, %22, %cst_11 [0] : vector<8x1xf32> to vector<1xf32>
    %24 = vector.shape_cast %23 : vector<1xf32> to vector<1x1xf32>
    %25 = vector.broadcast %6 : f32 to vector<1x1xf32>
    %26 = arith.divf %25, %24 : vector<1x1xf32>
    %27 = vector.broadcast %26 : vector<1x1xf32> to vector<8x1xf32>
    %28 = arith.mulf %21, %27 : vector<8x1xf32>
    %29 = arith.mulf %28, %13 : vector<8x1xf32>
    %cst_12 = arith.constant 1.000000e+00 : f32
    %30 = vector.broadcast %cst_12 : f32 to vector<8x1xf32>
    %31 = arith.maximumf %29, %30 : vector<8x1xf32>
    %32 = arith.divf %28, %31 : vector<8x1xf32>
    %33 = arith.mulf %32, %13 : vector<8x1xf32>
    %cst_13 = arith.constant dense<0.000000e+00> : vector<1xf32>
    %34 = vector.multi_reduction <add>, %33, %cst_13 [0] : vector<8x1xf32> to vector<1xf32>
    %35 = vector.shape_cast %34 : vector<1xf32> to vector<1x1xf32>
    %36 = vector.broadcast %6 : f32 to vector<1x1xf32>
    %37 = arith.divf %36, %35 : vector<1x1xf32>
    %38 = vector.broadcast %37 : vector<1x1xf32> to vector<8x1xf32>
    %39 = arith.mulf %32, %38 : vector<8x1xf32>
    %40 = arith.mulf %39, %13 : vector<8x1xf32>
    %cst_14 = arith.constant 1.000000e+00 : f32
    %41 = vector.broadcast %cst_14 : f32 to vector<8x1xf32>
    %42 = arith.maximumf %40, %41 : vector<8x1xf32>
    %43 = arith.divf %39, %42 : vector<8x1xf32>
    %44 = arith.mulf %43, %13 : vector<8x1xf32>
    %cst_15 = arith.constant dense<0.000000e+00> : vector<1xf32>
    %45 = vector.multi_reduction <add>, %44, %cst_15 [0] : vector<8x1xf32> to vector<1xf32>
    %46 = vector.shape_cast %45 : vector<1xf32> to vector<1x1xf32>
    %47 = vector.broadcast %6 : f32 to vector<1x1xf32>
    %48 = arith.divf %47, %46 : vector<1x1xf32>
    %49 = vector.broadcast %48 : vector<1x1xf32> to vector<8x1xf32>
    %50 = arith.mulf %43, %49 : vector<8x1xf32>
    %51 = arith.mulf %50, %13 : vector<8x1xf32>
    %cst_16 = arith.constant 1.000000e+00 : f32
    %52 = vector.broadcast %cst_16 : f32 to vector<8x1xf32>
    %53 = arith.maximumf %51, %52 : vector<8x1xf32>
    %54 = arith.divf %50, %53 : vector<8x1xf32>
    %55 = arith.mulf %54, %13 : vector<8x1xf32>
    %cst_17 = arith.constant dense<0.000000e+00> : vector<1xf32>
    %56 = vector.multi_reduction <add>, %55, %cst_17 [0] : vector<8x1xf32> to vector<1xf32>
    %57 = vector.shape_cast %56 : vector<1xf32> to vector<1x1xf32>
    %58 = vector.broadcast %6 : f32 to vector<1x1xf32>
    %59 = arith.divf %58, %57 : vector<1x1xf32>
    %60 = vector.broadcast %59 : vector<1x1xf32> to vector<8x1xf32>
    %61 = arith.mulf %54, %60 : vector<8x1xf32>
    %62 = arith.mulf %61, %13 : vector<8x1xf32>
    %cst_18 = arith.constant 1.000000e+00 : f32
    %63 = vector.broadcast %cst_18 : f32 to vector<8x1xf32>
    %64 = arith.maximumf %62, %63 : vector<8x1xf32>
    %65 = arith.divf %61, %64 : vector<8x1xf32>
    %66 = arith.mulf %65, %13 : vector<8x1xf32>
    %cst_19 = arith.constant dense<0.000000e+00> : vector<1xf32>
    %67 = vector.multi_reduction <add>, %66, %cst_19 [0] : vector<8x1xf32> to vector<1xf32>
    %68 = vector.shape_cast %67 : vector<1xf32> to vector<1x1xf32>
    %69 = vector.broadcast %6 : f32 to vector<1x1xf32>
    %70 = arith.divf %69, %68 : vector<1x1xf32>
    %71 = vector.broadcast %70 : vector<1x1xf32> to vector<8x1xf32>
    %72 = arith.mulf %65, %71 : vector<8x1xf32>
    %c0_20 = arith.constant 0 : index
    %c0_21 = arith.constant 0 : index
    %73 = vector.load %arg4[%c0_20, %c0_21] : memref<8x128xf32, #tpu.memory_space<vmem>>, vector<8x128xf32>
    %74 = vector.broadcast %8 : vector<8x1xf32> to vector<8x128xf32>
    %75 = arith.subf %4, %74 : vector<8x128xf32>
    %76 = arith.mulf %73, %75 : vector<8x128xf32>
    %cst_22 = arith.constant dense<0.000000e+00> : vector<8xf32>
    %77 = vector.multi_reduction <add>, %76, %cst_22 [1] : vector<8x128xf32> to vector<8xf32>
    %78 = vector.shape_cast %77 : vector<8xf32> to vector<8x1xf32>
    %cst_23 = arith.constant dense<0.000000e+00> : vector<1xf32>
    %79 = vector.multi_reduction <add>, %78, %cst_23 [0] : vector<8x1xf32> to vector<1xf32>
    %80 = vector.shape_cast %79 : vector<1xf32> to vector<1x1xf32>
    %cst_24 = arith.constant dense<0.000000e+00> : vector<8xf32>
    %81 = vector.multi_reduction <add>, %73, %cst_24 [1] : vector<8x128xf32> to vector<8xf32>
    %82 = vector.shape_cast %81 : vector<8xf32> to vector<8x1xf32>
    %83 = math.log %72 : vector<8x1xf32>
    %84 = arith.mulf %82, %83 : vector<8x1xf32>
    %cst_25 = arith.constant dense<0.000000e+00> : vector<1xf32>
    %85 = vector.multi_reduction <add>, %84, %cst_25 [0] : vector<8x1xf32> to vector<1xf32>
    %86 = vector.shape_cast %85 : vector<1xf32> to vector<1x1xf32>
    %87 = arith.addf %80, %86 : vector<1x1xf32>
    %cst_26 = arith.constant 0.000000e+00 : f32
    %88 = vector.broadcast %cst_26 : f32 to vector<1x1xf32>
    %89 = arith.subf %88, %87 : vector<1x1xf32>
    %c0_27 = arith.constant 0 : index
    %c0_28 = arith.constant 0 : index
    %90 = vector.load %arg6[%c0_27, %c0_28] : memref<1x1xf32, #tpu.memory_space<vmem>>, vector<1x1xf32>
    tpu.vector_store %arg6[%c0_27, %c0_28], %89 {strides = array<i32>} : memref<1x1xf32, #tpu.memory_space<vmem>>, vector<1x1xf32>,
    return
  }
  func.func @transform_0(%arg0: i32) -> i32 {
    %c0_i32 = arith.constant 0 : i32
    %c0_i32_0 = arith.constant 0 : i32
    return %c0_i32 : i32
  }
  func.func @transform_1(%arg0: i32) -> (i32, i32) {
    %c0_i32 = arith.constant 0 : i32
    %c0_i32_0 = arith.constant 0 : i32
    %c0_i32_1 = arith.constant 0 : i32
    return %c0_i32, %c0_i32_0 : i32, i32
  }
  func.func @transform_2(%arg0: i32) -> (i32, i32) {
    %c0_i32 = arith.constant 0 : i32
    %c0_i32_0 = arith.constant 0 : i32
    %c0_i32_1 = arith.constant 0 : i32
    return %c0_i32, %c0_i32_0 : i32, i32
  }
  func.func @transform_3(%arg0: i32) -> (i32, i32) {
    %c0_i32 = arith.constant 0 : i32
    %c0_i32_0 = arith.constant 0 : i32
    %c0_i32_1 = arith.constant 0 : i32
    return %c0_i32, %c0_i32_0 : i32, i32
  }
  func.func @transform_4(%arg0: i32) -> (i32, i32) {
    %c0_i32 = arith.constant 0 : i32
    %c0_i32_0 = arith.constant 0 : i32
    %c0_i32_1 = arith.constant 0 : i32
    return %c0_i32, %c0_i32_0 : i32, i32
  }
  func.func @transform_5(%arg0: i32) -> (i32, i32) {
    %c0_i32 = arith.constant 0 : i32
    %c0_i32_0 = arith.constant 0 : i32
    %c0_i32_1 = arith.constant 0 : i32
    return %c0_i32, %c0_i32_0 : i32, i32
  }
}

</mosaic_0001>

<llo_original>
// kernel: classify_anything_mixed_ot_loss.2
$region0: #{classify_anything_mixed_ot_loss.2}
  #allocation0 [shape = 'u32[]', space=smem, size = 0x4, offset = 0x4, fixed_abs, tag = 'smem constant byte address 0x4 - core index']
  #allocation1 [shape = 'u32[144,128]{1,0:T(1,128)}', space=vmem, size = 0x12000, scoped, tag = 'internal scratch']
  %s0 = inlined_call_operand.vmem [shape: bf16[8,128], index: 0, kind: input, shape index: {}]
  %s1 = inlined_call_operand.vmem [shape: bf16[256,128], index: 1, kind: input, shape index: {}]
  %s2 = inlined_call_operand.vmem [shape: bf16[8,256], index: 2, kind: input, shape index: {}]
  %s3 = inlined_call_operand.hbm [shape: f32[8,256], index: 3, kind: output, shape index: {0}]
  %s4 = inlined_call_operand.vmem [shape: f32[16,128], index: 4, kind: output, shape index: {1}]
  %5 = xla_tuple %s3, %s4
  %s6 = sld [smem:[#allocation0]]
  $region53: #{classify_anything_mixed_ot_loss.2} parent=0
    _
  %s8 = ssub.s32 1, %s6
  %s9 = scalar_select 0, %s8, %s6
  $region1: #{classify_anything_mixed_ot_loss.2} parent=0
    #allocation2 [shape = 'u8[8192]{0}', space=vmem, size = 0x2000, scoped, tag = 'output window, operand 0']
    #allocation3 [shape = 's32[2]{0}', space=sflag, size = 0x8, scoped, tag = 'scoped memory for classify_anything_mixed_ot_loss.2']
    %10 = vsyncpa [#allocation3], 0
    %s11 = scalar_lea.sflag [#allocation3], 1
    %12 = vsyncpa %s11, 0
    loop: start=0, step=1, limit=4
    $region2: #{classify_anything_mixed_ot_loss.2} parent=1 // loop_pre_header
      _
    $region3: #{classify_anything_mixed_ot_loss.2} parent=1 // loop_header
      %s14 = sphi 0, %s18
      %p15 = scmp.ge.s32.totalorder %s14, 4
      %s22 = sphi 0, %s22
      %s24 = sphi 0, %s22
      %s25 = sphi 0, %s24
      %s39 = sphi 0, %s25
      %s45 = sphi 0, %s47
      %s48 = sphi 0, %s45
      %s49 = sphi 0, %s48
      %s65 = sphi 0, %s49
      %s71 = sphi 0, %s73
      %s74 = sphi 0, %s71
      %s75 = sphi 0, %s74
      %s91 = sphi 0, %s75
      %s97 = sphi 0, %s99
      %s100 = sphi 0, %s97
      %s101 = sphi 0, %s100
      %s117 = sphi 0, %s101
      %s123 = sphi 0, %s125
      %s126 = sphi 0, %s123
      %s127 = sphi 0, %s126
      %s143 = sphi 0, %s127
    $region4: #{classify_anything_mixed_ot_loss.2} parent=1 // loop_header_branch
      %17 = sbr.rel (%p15) target = $region8
    $region5: #{classify_anything_mixed_ot_loss.2} parent=1 // loop_body
      %s19 = ssub.s32 %s14, 1
      %s20 = ssub.s32 %s14, 2
      %s21 = sadd.s32 %s14, 1
      %s23 = sadd.s32 %s22, 1
      %p26 = scmp.eq.s32.totalorder %s14, 1
      %p27 = scmp.ne.s32.totalorder %s22, %s24
      %p28 = scmp.eq.s32.totalorder %s14, 0
      %p29 = por %p27, %p28
      %p30 = scmp.ne.s32.totalorder %s22, %s24
      %p31 = scmp.eq.s32.totalorder %s19, 1
      %p32 = por %p30, %p31
      %p33 = scmp.ne.s32.totalorder %s24, %s25
      %p34 = scmp.eq.s32.totalorder %s19, 0
      %p35 = por %p33, %p34
      %p36 = scmp.ne.s32.totalorder %s24, %s25
      %p37 = scmp.eq.s32.totalorder %s20, 1
      %p38 = por %p36, %p37
      %p40 = scmp.ne.s32.totalorder %s25, %s39
      %p41 = scmp.eq.s32.totalorder %s20, 0
      %p42 = por %p40, %p41
      %s43 = ssub.s32 %s14, %s21
      %p44 = scmp.eq.s32.totalorder %s43, 0
      %s46 = sadd.s32 %s45, 1
      %s47 = scalar_select %p44, %s45, %s46
      %p50 = pneg %p44
      %p51 = scmp.eq.s32.totalorder %s14, 1
      %p52 = por %p50, %p51
      %p53 = scmp.ne.s32.totalorder %s45, %s48
      %p54 = scmp.eq.s32.totalorder %s14, 0
      %p55 = por %p53, %p54
      %p56 = scmp.ne.s32.totalorder %s45, %s48
      %p57 = scmp.eq.s32.totalorder %s19, 1
      %p58 = por %p56, %p57
      %p59 = scmp.ne.s32.totalorder %s48, %s49
      %p60 = scmp.eq.s32.totalorder %s19, 0
      %p61 = por %p59, %p60
      %p62 = scmp.ne.s32.totalorder %s48, %s49
      %p63 = scmp.eq.s32.totalorder %s20, 1
      %p64 = por %p62, %p63
      %p66 = scmp.ne.s32.totalorder %s49, %s65
      %p67 = scmp.eq.s32.totalorder %s20, 0
      %p68 = por %p66, %p67
      %s69 = ssub.s32 %s14, %s21
      %p70 = scmp.eq.s32.totalorder %s69, 0
      %s72 = sadd.s32 %s71, 1
      %s73 = scalar_select %p70, %s71, %s72
      %p76 = pneg %p70
      %p77 = scmp.eq.s32.totalorder %s14, 1
      %p78 = por %p76, %p77
      %p79 = scmp.ne.s32.totalorder %s71, %s74
      %p80 = scmp.eq.s32.totalorder %s14, 0
      %p81 = por %p79, %p80
      %p82 = scmp.ne.s32.totalorder %s71, %s74
      %p83 = scmp.eq.s32.totalorder %s19, 1
      %p84 = por %p82, %p83
      %p85 = scmp.ne.s32.totalorder %s74, %s75
      %p86 = scmp.eq.s32.totalorder %s19, 0
      %p87 = por %p85, %p86
      %p88 = scmp.ne.s32.totalorder %s74, %s75
      %p89 = scmp.eq.s32.totalorder %s20, 1
      %p90 = por %p88, %p89
      %p92 = scmp.ne.s32.totalorder %s75, %s91
      %p93 = scmp.eq.s32.totalorder %s20, 0
      %p94 = por %p92, %p93
      %s95 = ssub.s32 %s14, %s21
      %p96 = scmp.eq.s32.totalorder %s95, 0
      %s98 = sadd.s32 %s97, 1
      %s99 = scalar_select %p96, %s97, %s98
      %p102 = pneg %p96
      %p103 = scmp.eq.s32.totalorder %s14, 1
      %p104 = por %p102, %p103
      %p105 = scmp.ne.s32.totalorder %s97, %s100
      %p106 = scmp.eq.s32.totalorder %s14, 0
      %p107 = por %p105, %p106
      %p108 = scmp.ne.s32.totalorder %s97, %s100
      %p109 = scmp.eq.s32.totalorder %s19, 1
      %p110 = por %p108, %p109
      %p111 = scmp.ne.s32.totalorder %s100, %s101
      %p112 = scmp.eq.s32.totalorder %s19, 0
      %p113 = por %p111, %p112
      %p114 = scmp.ne.s32.totalorder %s100, %s101
      %p115 = scmp.eq.s32.totalorder %s20, 1
      %p116 = por %p114, %p115
      %p118 = scmp.ne.s32.totalorder %s101, %s117
      %p119 = scmp.eq.s32.totalorder %s20, 0
      %p120 = por %p118, %p119
      %s121 = ssub.s32 %s14, %s21
      %p122 = scmp.eq.s32.totalorder %s121, 0
      %s124 = sadd.s32 %s123, 1
      %s125 = scalar_select %p122, %s123, %s124
      %p128 = pneg %p122
      %p129 = scmp.eq.s32.totalorder %s14, 1
      %p130 = por %p128, %p129
      %p131 = scmp.ne.s32.totalorder %s123, %s126
      %p132 = scmp.eq.s32.totalorder %s14, 0
      %p133 = por %p131, %p132
      %p134 = scmp.ne.s32.totalorder %s123, %s126
      %p135 = scmp.eq.s32.totalorder %s19, 1
      %p136 = por %p134, %p135
      %p137 = scmp.ne.s32.totalorder %s126, %s127
      %p138 = scmp.eq.s32.totalorder %s19, 0
      %p139 = por %p137, %p138
      %p140 = scmp.ne.s32.totalorder %s126, %s127
      %p141 = scmp.eq.s32.totalorder %s20, 1
      %p142 = por %p140, %p141
      %p144 = scmp.ne.s32.totalorder %s127, %s143
      %p145 = scmp.eq.s32.totalorder %s20, 0
      %p146 = por %p144, %p145
      %p147 = scmp.le.s32.totalorder 1, %s14
      %p148 = scmp.lt.s32.totalorder %s14, 3
      %p149 = pnand %p147, %p148
      %p150 = pneg %p149
      // Predicated region
      $region9: #{classify_anything_mixed_ot_loss.2} parent=5 // pred_check
        _
      $region10: #{classify_anything_mixed_ot_loss.2} parent=5 // pred_check_branch
        %152 = sbr.rel (%p149) target = $region12
      $region11: #{classify_anything_mixed_ot_loss.2} parent=5 // pred_region
        %s153 = ssub.s32 %s14, 1
        // Predicated region
        $region13: #{classify_anything_mixed_ot_loss.2} parent=11 // pred_check
          %p154 = pneg %p35
        $region14: #{classify_anything_mixed_ot_loss.2} parent=11 // pred_check_branch
          %156 = sbr.rel (%p154) target = $region16
        $region15: #{classify_anything_mixed_ot_loss.2} parent=11 // pred_region
          _
        $region16: #{classify_anything_mixed_ot_loss.2} parent=11 // pred_fallthru
          _
      $region12: #{classify_anything_mixed_ot_loss.2} parent=5 // pred_fallthru
        _
      %p157 = scmp.lt.s32.totalorder %s14, 2
      // Predicated region
      $region17: #{classify_anything_mixed_ot_loss.2} parent=5 // pred_check
        %p158 = pneg %p157
      $region18: #{classify_anything_mixed_ot_loss.2} parent=5 // pred_check_branch
        %160 = sbr.rel (%p158) target = $region20
      $region19: #{classify_anything_mixed_ot_loss.2} parent=5 // pred_region
        // Predicated region
        $region21: #{classify_anything_mixed_ot_loss.2} parent=19 // pred_check
          %p161 = pneg %p55
        $region22: #{classify_anything_mixed_ot_loss.2} parent=19 // pred_check_branch
          %163 = sbr.rel (%p161) target = $region24
        $region23: #{classify_anything_mixed_ot_loss.2} parent=19 // pred_region
          %s164 = smul.u32 16, %s14
          %p165 = scmp.lt.s32.totalorder %s164, 31
          %s166 = scalar_select %p165, %s164, 31
          %s167 = smul.addr %s166, 4
          %s168 = scalar_lea.vmem %s1, %s167
          %s169 = smul.u32 16, %s14
        $region24: #{classify_anything_mixed_ot_loss.2} parent=19 // pred_fallthru
          _
        // Predicated region
        $region25: #{classify_anything_mixed_ot_loss.2} parent=19 // pred_check
          %p170 = pneg %p81
        $region26: #{classify_anything_mixed_ot_loss.2} parent=19 // pred_check_branch
          %172 = sbr.rel (%p170) target = $region28
        $region27: #{classify_anything_mixed_ot_loss.2} parent=19 // pred_region
          %p173 = scmp.lt.s32.totalorder %s14, 1
          %s174 = scalar_select %p173, %s14, 1
          %s175 = smul.addr %s174, 4
          %s176 = scalar_lea.vmem %s2, %s175
        $region28: #{classify_anything_mixed_ot_loss.2} parent=19 // pred_fallthru
          _
      $region20: #{classify_anything_mixed_ot_loss.2} parent=5 // pred_fallthru
        _
      %p177 = scmp.le.s32.totalorder 1, %s14
      %p178 = scmp.lt.s32.totalorder %s14, 3
      %p179 = pnand %p177, %p178
      %p180 = pneg %p179
      // Predicated region
      $region29: #{classify_anything_mixed_ot_loss.2} parent=5 // pred_check
        _
      $region30: #{classify_anything_mixed_ot_loss.2} parent=5 // pred_check_branch
        %182 = sbr.rel (%p179) target = $region32
      $region31: #{classify_anything_mixed_ot_loss.2} parent=5 // pred_region
        %s183 = ssub.s32 %s14, 1
        %p184 = pneg %p35
        %p185 = pneg %p32
        %s186 = smul.u32 16, %s19
        %p187 = scmp.lt.s32.totalorder %s186, 31
        %s188 = scalar_select %p187, %s186, 31
        %s189 = smul.addr %s188, 4
        %s190 = scalar_lea.vmem %s1, %s189
        %p191 = pneg %p61
        %p192 = pneg %p58
        %p193 = scmp.lt.s32.totalorder %s19, 1
        %s194 = scalar_select %p193, %s19, 1
        %s195 = smul.addr %s194, 4
        %s196 = scalar_lea.vmem %s2, %s195
        %p197 = pneg %p87
        %p198 = pneg %p84
        %p199 = pneg %p113
        %p200 = pneg %p110
        %s201 = sand.u32 %s100, 1
        %s202 = scalar_lea.sflag [#allocation3], %s201
        %s203 = sand.u32 %s100, 1
        %s204 = smul.addr %s203, 8
        %s205 = scalar_lea.vmem [#allocation2], %s204
        %p206 = pneg %p139
        %p207 = pneg %p136
        %p208 = scmp.lt.s32.totalorder %s19, 1
        %s209 = scalar_select %p208, %s19, 1
        %s210 = smul.addr %s209, 8
        %s211 = scalar_lea.vmem %s4, %s210
        %s212 = smul.u32 16, %s19
        %p213 = scmp.lt.s32.totalorder %s212, 31
        %s214 = scalar_select %p213, %s212, 31
        %s215 = smul.addr %s214, 4
        %s216 = scalar_lea.vmem %s1, %s215
        %s217 = smul.u32 16, %s19
        %p218 = scmp.lt.s32.totalorder %s19, 1
        %s219 = scalar_select %p218, %s19, 1
        %s220 = smul.addr %s219, 4
        %s221 = scalar_lea.vmem %s2, %s220
        %p222 = scmp.lt.s32.totalorder %s19, 1
        %s223 = scalar_select %p222, %s19, 1
        %s224 = smul.addr %s223, 8
        %s225 = scalar_lea.vmem %s4, %s224
        %v230 = vld [vmem:[%s0] sm:$0xf]
        %v231 = vld [vmem:[%s216] sm:$0xf]
        %v232 = vld [vmem:[%s216 + $0x4] sm:$0xf]
        %v233 = vld [vmem:[%s216 + $0x8] sm:$0xf]
        %v234 = vld [vmem:[%s216 + $0xc] sm:$0xf]
        %v235 = vld [vmem:[%s216 + $0x10] sm:$0xf]
        %v236 = vld [vmem:[%s216 + $0x14] sm:$0xf]
        %v237 = vld [vmem:[%s216 + $0x18] sm:$0xf]
        %v238 = vld [vmem:[%s216 + $0x1c] sm:$0xf]
        %v239 = vld [vmem:[%s216 + $0x20] sm:$0xf]
        %v240 = vld [vmem:[%s216 + $0x24] sm:$0xf]
        %v241 = vld [vmem:[%s216 + $0x28] sm:$0xf]
        %v242 = vld [vmem:[%s216 + $0x2c] sm:$0xf]
        %v243 = vld [vmem:[%s216 + $0x30] sm:$0xf]
        %v244 = vld [vmem:[%s216 + $0x34] sm:$0xf]
        %v245 = vld [vmem:[%s216 + $0x38] sm:$0xf]
        %v246 = vld [vmem:[%s216 + $0x3c] sm:$0xf]
        %v263 = vunpack.c.l.b16 %v231
        %v264 = vunpack.c.l.b16 %v232
        %v265 = vunpack.c.l.b16 %v233
        %v266 = vunpack.c.l.b16 %v234
        %v267 = vunpack.c.l.b16 %v235
        %v268 = vunpack.c.l.b16 %v236
        %v269 = vunpack.c.l.b16 %v237
        %v270 = vunpack.c.l.b16 %v238
        %v271 = vunpack.c.l.b16 %v239
        %v272 = vunpack.c.l.b16 %v240
        %v273 = vunpack.c.l.b16 %v241
        %v274 = vunpack.c.l.b16 %v242
        %v275 = vunpack.c.l.b16 %v243
        %v276 = vunpack.c.l.b16 %v244
        %v277 = vunpack.c.l.b16 %v245
        %v278 = vunpack.c.l.b16 %v246
        %v279 = vpack.c.b16 %v264, %v263
        %v280 = vpack.c.b16 %v266, %v265
        %v281 = vpack.c.b16 %v268, %v267
        %v282 = vpack.c.b16 %v270, %v269
        %v283 = vpack.c.b16 %v272, %v271
        %v284 = vpack.c.b16 %v274, %v273
        %v285 = vpack.c.b16 %v276, %v275
        %v286 = vpack.c.b16 %v278, %v277
        %295 = vmatprep.subr.bf16.mxu0 0
        %296 = vmatpush1.bf16.xpose.msra.mxu0 %v279
        %297 = vmatprep.subr.bf16.mxu0 0
        %298 = vmatpush1.bf16.xpose.msra.mxu0 %v280
        %299 = vmatprep.subr.bf16.mxu0 0
        %300 = vmatpush1.bf16.xpose.msra.mxu0 %v281
        %301 = vmatprep.subr.bf16.mxu0 0
        %302 = vmatpush1.bf16.xpose.msra.mxu0 %v282
        %303 = vmatprep.subr.bf16.mxu0 0
        %304 = vmatpush1.bf16.xpose.msra.mxu0 %v283
        %305 = vmatprep.subr.bf16.mxu0 0
        %306 = vmatpush1.bf16.xpose.msra.mxu0 %v284
        %307 = vmatprep.subr.bf16.mxu0 0
        %308 = vmatpush1.bf16.xpose.msra.mxu0 %v285
        %309 = vmatprep.subr.bf16.mxu0 0
        %310 = vmatpush1.bf16.xpose.msra.mxu0 %v286
        %311 = vmatprep.subr.bf16.mxu0 0
        %312 = vmatpush1.bf16.xpose.msra.mxu0 0
        %313 = vmatprep.subr.bf16.mxu0 0
        %314 = vmatpush1.bf16.xpose.msra.mxu0 0
        %315 = vmatprep.subr.bf16.mxu0 0
        %316 = vmatpush1.bf16.xpose.msra.mxu0 0
        %317 = vmatprep.subr.bf16.mxu0 0
        %318 = vmatpush1.bf16.xpose.msra.mxu0 0
        %319 = vmatprep.subr.bf16.mxu0 0
        %320 = vmatpush1.bf16.xpose.msra.mxu0 0
        %321 = vmatprep.subr.bf16.mxu0 0
        %322 = vmatpush1.bf16.xpose.msra.mxu0 0
        %323 = vmatprep.subr.bf16.mxu0 0
        %324 = vmatpush1.bf16.xpose.msra.mxu0 0
        %325 = vmatprep.subr.bf16.mxu0 0
        %326 = vmatpush1.bf16.xpose.msra.mxu0 0
        %327 = vmatprep.mubr.bf16.mxu0 0
        %328 = vmatmul.mubr.bf16.gmra.mrb[0].mxu0 %v230
        %v329 = vpop.f32.mrb[0].mxu0
        %v330 = vadd.f32 0.0, %v329
        %v331 = vpop.f32.mrb[0].mxu0
        %v332 = vpop.f32.mrb[0].mxu0
        %v333 = vpop.f32.mrb[0].mxu0
        %334 = vdwg.mxu0
        %v335 = vmul.f32 %v330, 2.0
        %336 = vst [vmem:[%s205] sm:$0xff] %v335
        %v337 = vld [vmem:[%s221] sm:$0xf]
        %vm338 = vcmp.gt.bf16.partialorder %v337, 1056980736
        %v339 = vsub.f32 0.0, %v335
        %v340 = vmul.f32 %v339, 1.442695
        %v341 = vpow.pop %v340
        %v342 = vadd.f32 %v341, 1.0
        %v343 = vrcp.pop %v342
        %v344 = vsub.f32 1.0, %v343
        %v345 = vadd.f32 %v344, 0.05
        %v346 = vmin.f32 %v345, 1.0
        %v347 = vsel %vm338, 65537, 0
        %v348 = vunpack.c.l.b16 %v347
        %vm349 = vcmp.ne.s32.totalorder %v348, 0
        %v350 = vsel %vm349, %v343, %v346
        %v351 = vmax.f32 %v350, 1e-08
        %v352 = vlog2.pop %v351
        %v353 = vmul.f32 %v352, 0.6931472
        %v354 = vsub.f32 1.0, %v346
        %v355 = vsel %vm349, %v344, %v354
        %v356 = vmul.f32 %v355, %v355
        %v357 = vmul.f32 %v356, %v356
        %v358 = vsel %vm349, %v344, %v357
        %v359 = vmul.f32 %v353, %v358
        %360 = vadd.xlane.f32.xlu0 %v359
        %v361 = vpop.xlane.xlu0 %360
        %v362 = vrot.slane %v361, 4
        %v363 = vadd.f32 %v361, %v362
        %v364 = vrot.slane %v363, 2
        %v365 = vadd.f32 %v363, %v364
        %v366 = vrot.slane %v365, 1
        %v367 = vadd.f32 %v365, %v366
        %368 = vst [vmem:[%s225] sm:$0xff] %v367
        %s369 = sand.u32 %s100, 1
        %s370 = scalar_lea.sflag [#allocation3], %s369
        %s371 = sand.u32 %s100, 1
        %s372 = smul.addr %s371, 8
        %s373 = scalar_lea.vmem [#allocation2], %s372
        %p374 = scmp.lt.s32.totalorder %s19, 1
        %s375 = scalar_select %p374, %s19, 1
        %s376 = smul.addr %s375, 8
        %s377 = scalar_lea.vmem %s4, %s376
        // Predicated region
        $region33: #{classify_anything_mixed_ot_loss.2} parent=31 // pred_check
          %p378 = pneg %p110
        $region34: #{classify_anything_mixed_ot_loss.2} parent=31 // pred_check_branch
          %380 = sbr.rel (%p378) target = $region36
        $region35: #{classify_anything_mixed_ot_loss.2} parent=31 // pred_region
          %s382 = ssub.s32 128, 128
          %383 = vsyncadd %s370, %s382
          %s384 = smul.addr %s19, 128
          %s385 = scalar_lea.hbm %s3, %s384
          %s387 = sshll.u32 %s373, 4
          %s388 = int_to_ptr.vmem [resolvable:$true] %s387
          %390 = dma.vmem_to_hbm [thread:$0]  %s388, 128, %s385, %s370
        $region36: #{classify_anything_mixed_ot_loss.2} parent=31 // pred_fallthru
          _
        // Predicated region
        $region37: #{classify_anything_mixed_ot_loss.2} parent=31 // pred_check
          %p391 = pneg %p136
        $region38: #{classify_anything_mixed_ot_loss.2} parent=31 // pred_check_branch
          %393 = sbr.rel (%p391) target = $region40
        $region39: #{classify_anything_mixed_ot_loss.2} parent=31 // pred_region
          _
        $region40: #{classify_anything_mixed_ot_loss.2} parent=31 // pred_fallthru
          _
      $region32: #{classify_anything_mixed_ot_loss.2} parent=5 // pred_fallthru
        _
      %p394 = scmp.le.s32.totalorder 2, %s14
      // Predicated region
      $region41: #{classify_anything_mixed_ot_loss.2} parent=5 // pred_check
        %p395 = pneg %p394
      $region42: #{classify_anything_mixed_ot_loss.2} parent=5 // pred_check_branch
        %397 = sbr.rel (%p395) target = $region44
      $region43: #{classify_anything_mixed_ot_loss.2} parent=5 // pred_region
        %s398 = ssub.s32 %s14, 2
        // Predicated region
        $region45: #{classify_anything_mixed_ot_loss.2} parent=43 // pred_check
          %p399 = pneg %p116
        $region46: #{classify_anything_mixed_ot_loss.2} parent=43 // pred_check_branch
          %401 = sbr.rel (%p399) target = $region48
        $region47: #{classify_anything_mixed_ot_loss.2} parent=43 // pred_region
          %s402 = sand.u32 %s101, 1
          %s403 = scalar_lea.sflag [#allocation3], %s402
          %s404 = sand.u32 %s101, 1
          %s405 = smul.addr %s404, 8
          %s406 = scalar_lea.vmem [#allocation2], %s405
          %407 = dma.done %s403, 128
        $region48: #{classify_anything_mixed_ot_loss.2} parent=43 // pred_fallthru
          _
        // Predicated region
        $region49: #{classify_anything_mixed_ot_loss.2} parent=43 // pred_check
          %p408 = pneg %p142
        $region50: #{classify_anything_mixed_ot_loss.2} parent=43 // pred_check_branch
          %410 = sbr.rel (%p408) target = $region52
        $region51: #{classify_anything_mixed_ot_loss.2} parent=43 // pred_region
          %p411 = scmp.lt.s32.totalorder %s20, 1
          %s412 = scalar_select %p411, %s20, 1
          %s413 = smul.addr %s412, 8
          %s414 = scalar_lea.vmem %s4, %s413
        $region52: #{classify_anything_mixed_ot_loss.2} parent=43 // pred_fallthru
          _
      $region44: #{classify_anything_mixed_ot_loss.2} parent=5 // pred_fallthru
        _
    $region6: #{classify_anything_mixed_ot_loss.2} parent=1 // loop_footer
      %s18 = sadd.s32 1, %s14
    $region7: #{classify_anything_mixed_ot_loss.2} parent=1 // loop_footer_branch
      %13 = sbr.rel target = $region3
    $region8: #{classify_anything_mixed_ot_loss.2} parent=1 // loop_exit
      _
    %415 = vsyncpa [#allocation3], 1
    %s416 = scalar_lea.sflag [#allocation3], 1
    %417 = vsyncpa %s416, 1

// kernel: classify_anything_mixed_ot_loss.3
$region0: #{classify_anything_mixed_ot_loss.3}
  #allocation0 [shape = 'u32[]', space=smem, size = 0x4, offset = 0x4, fixed_abs, tag = 'smem constant byte address 0x4 - core index']
  #allocation1 [shape = 'u32[144,128]{1,0:T(1,128)}', space=vmem, size = 0x12000, scoped, tag = 'internal scratch']
  #allocation2 [shape = 'f32[1]{0:T(128)S(6)}', space=smem, size = 0x200, scoped, tag = 'scoped memory for classify_anything_mixed_ot_loss.3']
  %s0 = inlined_call_operand.<no memory space> [shape: f32[1], index: 0, kind: input, shape index: {}]
  %s1 = inlined_call_operand.vmem [shape: bf16[8,128], index: 1, kind: input, shape index: {}]
  %s2 = inlined_call_operand.vmem [shape: bf16[128,128], index: 2, kind: input, shape index: {}]
  %s3 = inlined_call_operand.vmem [shape: f32[8,128], index: 3, kind: input, shape index: {}]
  %s4 = inlined_call_operand.hbm [shape: f32[8,128], index: 4, kind: output, shape index: {0}]
  %s5 = inlined_call_operand.hbm [shape: f32[1,1], index: 5, kind: output, shape index: {1}]
  %6 = xla_tuple %s4, %s5
  %s7 = sld [smem:[#allocation0]]
  $region34: #{classify_anything_mixed_ot_loss.3} parent=0
    _
  %s9 = ssub.s32 1, %s7
  %s10 = scalar_select 0, %s9, %s7
  %11 = sst [smem:[#allocation2]] %s0
  $region1: #{classify_anything_mixed_ot_loss.3} parent=0
    #allocation3 [shape = 'u8[4096]{0}', space=vmem, size = 0x1000, scoped, tag = 'output window, operand 0, single buffered']
    #allocation4 [shape = 's32[1]{0}', space=sflag, size = 0x4, scoped, tag = 'scoped memory for classify_anything_mixed_ot_loss.3']
    #allocation5 [shape = 'u8[512]{0}', space=vmem, size = 0x400, scoped, tag = 'output window, operand 1, single buffered']
    #allocation6 [shape = 's32[1]{0}', space=sflag, size = 0x4, scoped, tag = 'scoped memory for classify_anything_mixed_ot_loss.3']
    %12 = vsyncpa [#allocation4], 0
    %13 = vsyncpa [#allocation6], 0
    // Predicated region
    $region2: #{classify_anything_mixed_ot_loss.3} parent=1 // pred_check
      _
    $region3: #{classify_anything_mixed_ot_loss.3} parent=1 // pred_check_branch
      %15 = sbr.rel (0) target = $region5
    $region4: #{classify_anything_mixed_ot_loss.3} parent=1 // pred_region
      _
    $region5: #{classify_anything_mixed_ot_loss.3} parent=1 // pred_fallthru
      _
    // Predicated region
    $region6: #{classify_anything_mixed_ot_loss.3} parent=1 // pred_check
      _
    $region7: #{classify_anything_mixed_ot_loss.3} parent=1 // pred_check_branch
      %17 = sbr.rel (0) target = $region9
    $region8: #{classify_anything_mixed_ot_loss.3} parent=1 // pred_region
      _
    $region9: #{classify_anything_mixed_ot_loss.3} parent=1 // pred_fallthru
      _
    // Predicated region
    $region10: #{classify_anything_mixed_ot_loss.3} parent=1 // pred_check
      _
    $region11: #{classify_anything_mixed_ot_loss.3} parent=1 // pred_check_branch
      %19 = sbr.rel (0) target = $region13
    $region12: #{classify_anything_mixed_ot_loss.3} parent=1 // pred_region
      _
    $region13: #{classify_anything_mixed_ot_loss.3} parent=1 // pred_fallthru
      _
    // Predicated region
    $region14: #{classify_anything_mixed_ot_loss.3} parent=1 // pred_check
      _
    $region15: #{classify_anything_mixed_ot_loss.3} parent=1 // pred_check_branch
      %21 = sbr.rel (0) target = $region17
    $region16: #{classify_anything_mixed_ot_loss.3} parent=1 // pred_region
      _
    $region17: #{classify_anything_mixed_ot_loss.3} parent=1 // pred_fallthru
      _
    %v23 = vld [vmem:[%s1] sm:$0xf]
    %v24 = vld [vmem:[%s2] sm:$0xf]
    %v25 = vld [vmem:[%s2 + $0x4] sm:$0xf]
    %v26 = vld [vmem:[%s2 + $0x8] sm:$0xf]
    %v27 = vld [vmem:[%s2 + $0xc] sm:$0xf]
    %v28 = vld [vmem:[%s2 + $0x10] sm:$0xf]
    %v29 = vld [vmem:[%s2 + $0x14] sm:$0xf]
    %v30 = vld [vmem:[%s2 + $0x18] sm:$0xf]
    %v31 = vld [vmem:[%s2 + $0x1c] sm:$0xf]
    %v32 = vld [vmem:[%s2 + $0x20] sm:$0xf]
    %v33 = vld [vmem:[%s2 + $0x24] sm:$0xf]
    %v34 = vld [vmem:[%s2 + $0x28] sm:$0xf]
    %v35 = vld [vmem:[%s2 + $0x2c] sm:$0xf]
    %v36 = vld [vmem:[%s2 + $0x30] sm:$0xf]
    %v37 = vld [vmem:[%s2 + $0x34] sm:$0xf]
    %v38 = vld [vmem:[%s2 + $0x38] sm:$0xf]
    %v39 = vld [vmem:[%s2 + $0x3c] sm:$0xf]
    %v56 = vunpack.c.l.b16 %v24
    %v57 = vunpack.c.l.b16 %v25
    %v58 = vunpack.c.l.b16 %v26
    %v59 = vunpack.c.l.b16 %v27
    %v60 = vunpack.c.l.b16 %v28
    %v61 = vunpack.c.l.b16 %v29
    %v62 = vunpack.c.l.b16 %v30
    %v63 = vunpack.c.l.b16 %v31
    %v64 = vunpack.c.l.b16 %v32
    %v65 = vunpack.c.l.b16 %v33
    %v66 = vunpack.c.l.b16 %v34
    %v67 = vunpack.c.l.b16 %v35
    %v68 = vunpack.c.l.b16 %v36
    %v69 = vunpack.c.l.b16 %v37
    %v70 = vunpack.c.l.b16 %v38
    %v71 = vunpack.c.l.b16 %v39
    %v72 = vpack.c.b16 %v57, %v56
    %v73 = vpack.c.b16 %v59, %v58
    %v74 = vpack.c.b16 %v61, %v60
    %v75 = vpack.c.b16 %v63, %v62
    %v76 = vpack.c.b16 %v65, %v64
    %v77 = vpack.c.b16 %v67, %v66
    %v78 = vpack.c.b16 %v69, %v68
    %v79 = vpack.c.b16 %v71, %v70
    %88 = vmatprep.subr.bf16.mxu0 0
    %89 = vmatpush1.bf16.xpose.msra.mxu0 %v72
    %90 = vmatprep.subr.bf16.mxu0 0
    %91 = vmatpush1.bf16.xpose.msra.mxu0 %v73
    %92 = vmatprep.subr.bf16.mxu0 0
    %93 = vmatpush1.bf16.xpose.msra.mxu0 %v74
    %94 = vmatprep.subr.bf16.mxu0 0
    %95 = vmatpush1.bf16.xpose.msra.mxu0 %v75
    %96 = vmatprep.subr.bf16.mxu0 0
    %97 = vmatpush1.bf16.xpose.msra.mxu0 %v76
    %98 = vmatprep.subr.bf16.mxu0 0
    %99 = vmatpush1.bf16.xpose.msra.mxu0 %v77
    %100 = vmatprep.subr.bf16.mxu0 0
    %101 = vmatpush1.bf16.xpose.msra.mxu0 %v78
    %102 = vmatprep.subr.bf16.mxu0 0
    %103 = vmatpush1.bf16.xpose.msra.mxu0 %v79
    %104 = vmatprep.subr.bf16.mxu0 0
    %105 = vmatpush1.bf16.xpose.msra.mxu0 0
    %106 = vmatprep.subr.bf16.mxu0 0
    %107 = vmatpush1.bf16.xpose.msra.mxu0 0
    %108 = vmatprep.subr.bf16.mxu0 0
    %109 = vmatpush1.bf16.xpose.msra.mxu0 0
    %110 = vmatprep.subr.bf16.mxu0 0
    %111 = vmatpush1.bf16.xpose.msra.mxu0 0
    %112 = vmatprep.subr.bf16.mxu0 0
    %113 = vmatpush1.bf16.xpose.msra.mxu0 0
    %114 = vmatprep.subr.bf16.mxu0 0
    %115 = vmatpush1.bf16.xpose.msra.mxu0 0
    %116 = vmatprep.subr.bf16.mxu0 0
    %117 = vmatpush1.bf16.xpose.msra.mxu0 0
    %118 = vmatprep.subr.bf16.mxu0 0
    %119 = vmatpush1.bf16.xpose.msra.mxu0 0
    %120 = vmatprep.mubr.bf16.mxu0 0
    %121 = vmatmul.mubr.bf16.gmra.mrb[0].mxu0 %v23
    %v122 = vpop.f32.mrb[0].mxu0
    %v123 = vadd.f32 0.0, %v122
    %v124 = vpop.f32.mrb[0].mxu0
    %v125 = vpop.f32.mrb[0].mxu0
    %v126 = vpop.f32.mrb[0].mxu0
    %127 = vdwg.mxu0
    %v128 = vmul.f32 %v123, 2.0
    %129 = vst [vmem:[#allocation3] sm:$0xff] %v128
    %s130 = sld [smem:[#allocation2]]
    %131 = vmax.xlane.f32.xlu0 %v128
    %v132 = vpop.xlane.xlu0 %131
    %v133 = vsub.f32 %v128, %v132
    %v134 = vmul.f32 %v133, 1.442695
    %v135 = vpow.pop %v134
    %136 = vadd.xlane.f32.xlu0 %v135
    %v137 = vpop.xlane.xlu0 %136
    %v138 = vlog2.pop %v137
    %v139 = vmul.f32 %v138, 0.6931472
    %v140 = vadd.f32 %v132, %v139
    %vm141 = vcmp.ge.f32.partialorder %v140, 0.0
    %v142 = vrcp.pop %v137
    %v143 = vmul.f32 1.0, %v142
    %v144 = vmul.f32 %v132, 1.442695
    %v145 = vpow.pop %v144
    %v146 = vsel %vm141, %v143, %v145
    %v147 = vmul.f32 %v146, %v137
    %v148 = vrot.slane %v147, 4
    %v149 = vadd.f32 %v147, %v148
    %v150 = vrot.slane %v149, 2
    %v151 = vadd.f32 %v149, %v150
    %v152 = vrot.slane %v151, 1
    %v153 = vadd.f32 %v151, %v152
    %v154 = vstv %s130
    %v155 = vrcp.pop %v153
    %v156 = vmul.f32 %v154, %v155
    %v157 = vmul.f32 %v146, %v156
    %v158 = vmul.f32 %v157, %v137
    %v159 = vmax.f32 %v158, 1.0
    %v160 = vrcp.pop %v159
    %v161 = vmul.f32 %v157, %v160
    %v162 = vmul.f32 %v161, %v137
    %v163 = vrot.slane %v162, 4
    %v164 = vadd.f32 %v162, %v163
    %v165 = vrot.slane %v164, 2
    %v166 = vadd.f32 %v164, %v165
    %v167 = vrot.slane %v166, 1
    %v168 = vadd.f32 %v166, %v167
    %v169 = vrcp.pop %v168
    %v170 = vmul.f32 %v154, %v169
    %v171 = vmul.f32 %v161, %v170
    %v172 = vmul.f32 %v171, %v137
    %v173 = vmax.f32 %v172, 1.0
    %v174 = vrcp.pop %v173
    %v175 = vmul.f32 %v171, %v174
    %v176 = vmul.f32 %v175, %v137
    %v177 = vrot.slane %v176, 4
    %v178 = vadd.f32 %v176, %v177
    %v179 = vrot.slane %v178, 2
    %v180 = vadd.f32 %v178, %v179
    %v181 = vrot.slane %v180, 1
    %v182 = vadd.f32 %v180, %v181
    %v183 = vrcp.pop %v182
    %v184 = vmul.f32 %v154, %v183
    %v185 = vmul.f32 %v175, %v184
    %v186 = vmul.f32 %v185, %v137
    %v187 = vmax.f32 %v186, 1.0
    %v188 = vrcp.pop %v187
    %v189 = vmul.f32 %v185, %v188
    %v190 = vmul.f32 %v189, %v137
    %v191 = vrot.slane %v190, 4
    %v192 = vadd.f32 %v190, %v191
    %v193 = vrot.slane %v192, 2
    %v194 = vadd.f32 %v192, %v193
    %v195 = vrot.slane %v194, 1
    %v196 = vadd.f32 %v194, %v195
    %v197 = vrcp.pop %v196
    %v198 = vmul.f32 %v154, %v197
    %v199 = vmul.f32 %v189, %v198
    %v200 = vmul.f32 %v199, %v137
    %v201 = vmax.f32 %v200, 1.0
    %v202 = vrcp.pop %v201
    %v203 = vmul.f32 %v199, %v202
    %v204 = vmul.f32 %v203, %v137
    %v205 = vrot.slane %v204, 4
    %v206 = vadd.f32 %v204, %v205
    %v207 = vrot.slane %v206, 2
    %v208 = vadd.f32 %v206, %v207
    %v209 = vrot.slane %v208, 1
    %v210 = vadd.f32 %v208, %v209
    %v211 = vrcp.pop %v210
    %v212 = vmul.f32 %v154, %v211
    %v213 = vmul.f32 %v203, %v212
    %v214 = vld [vmem:[%s3] sm:$0xff]
    %v215 = vmul.f32 %v214, %v133
    %216 = vadd.xlane.f32.xlu0 %v215
    %v217 = vpop.xlane.xlu0 %216
    %v218 = vrot.slane %v217, 4
    %v219 = vadd.f32 %v217, %v218
    %v220 = vrot.slane %v219, 2
    %v221 = vadd.f32 %v219, %v220
    %v222 = vrot.slane %v221, 1
    %v223 = vadd.f32 %v221, %v222
    %224 = vadd.xlane.f32.xlu0 %v214
    %v225 = vpop.xlane.xlu0 %224
    %v226 = vlog2.pop %v213
    %v227 = vmul.f32 %v226, 0.6931472
    %v228 = vmul.f32 %v225, %v227
    %v229 = vrot.slane %v228, 4
    %v230 = vadd.f32 %v228, %v229
    %v231 = vrot.slane %v230, 2
    %v232 = vadd.f32 %v230, %v231
    %v233 = vrot.slane %v232, 1
    %v234 = vadd.f32 %v232, %v233
    %v235 = vadd.f32 %v223, %v234
    %v236 = vsub.f32 0.0, %v235
    %vm237 = vcmask 0
    %238 = vst.msk [vmem:[#allocation5] sm:$0x1] %vm237, %v236
    // Predicated region
    $region18: #{classify_anything_mixed_ot_loss.3} parent=1 // pred_check
      _
    $region19: #{classify_anything_mixed_ot_loss.3} parent=1 // pred_check_branch
      %240 = sbr.rel (0) target = $region21
    $region20: #{classify_anything_mixed_ot_loss.3} parent=1 // pred_region
      %s242 = ssub.s32 128, 128
      %243 = vsyncadd [#allocation4], %s242
      %s245 = sshll.u32 [#allocation3], 4
      %s246 = int_to_ptr.vmem [resolvable:$true] %s245
      %248 = dma.vmem_to_hbm [thread:$0]  %s246, 128, %s4, [#allocation4]
    $region21: #{classify_anything_mixed_ot_loss.3} parent=1 // pred_fallthru
      _
    // Predicated region
    $region22: #{classify_anything_mixed_ot_loss.3} parent=1 // pred_check
      _
    $region23: #{classify_anything_mixed_ot_loss.3} parent=1 // pred_check_branch
      %250 = sbr.rel (0) target = $region25
    $region24: #{classify_anything_mixed_ot_loss.3} parent=1 // pred_region
      %s252 = ssub.s32 16, 16
      %253 = vsyncadd [#allocation6], %s252
      %s255 = sshll.u32 [#allocation5], 4
      %s256 = int_to_ptr.vmem [resolvable:$true] %s255
      %258 = dma.vmem_to_hbm [thread:$0]  %s256, 16, %s5, [#allocation6]
    $region25: #{classify_anything_mixed_ot_loss.3} parent=1 // pred_fallthru
      _
    // Predicated region
    $region26: #{classify_anything_mixed_ot_loss.3} parent=1 // pred_check
      _
    $region27: #{classify_anything_mixed_ot_loss.3} parent=1 // pred_check_branch
      %260 = sbr.rel (0) target = $region29
    $region28: #{classify_anything_mixed_ot_loss.3} parent=1 // pred_region
      %261 = dma.done [#allocation4], 128
    $region29: #{classify_anything_mixed_ot_loss.3} parent=1 // pred_fallthru
      _
    // Predicated region
    $region30: #{classify_anything_mixed_ot_loss.3} parent=1 // pred_check
      _
    $region31: #{classify_anything_mixed_ot_loss.3} parent=1 // pred_check_branch
      %263 = sbr.rel (0) target = $region33
    $region32: #{classify_anything_mixed_ot_loss.3} parent=1 // pred_region
      %264 = dma.done [#allocation6], 16
    $region33: #{classify_anything_mixed_ot_loss.3} parent=1 // pred_fallthru
      _
    %265 = vsyncpa [#allocation4], 1
    %266 = vsyncpa [#allocation6], 1

</llo_original>
